<compile_context>
chip_gen: v7x
topology: tpu7x:2x2x1
jax: 0.10.0
libtpu: 0.0.40
codegen_flags: <defaults>
</compile_context>

<pallas_src>
from functools import partial
import math

import jax
import jax.numpy as jnp
import numpy as np
from jax.experimental import pallas as pl
from jax.experimental.pallas import tpu as pltpu


# ----------------------------------------------------------------------------
# Kernel
# ----------------------------------------------------------------------------
def _cdf_kernel(p_ref, x_ref, o_ref, *, d_in, d_out, act):
    """One (channel-tile, N-tile) block.

    p_ref : (D_out, D_in + nbf, TC)  precomputed params per channel lane:
            cols [0, D_in) = softplus(weight), col D_in = bias,
            col D_in + 1   = tanh(factor)      (only when act=True)
    x_ref : (D_in,  TN, TC)
    o_ref : (D_out, TN, TC)
    """
    p = p_ref[...].astype(jnp.float32)                    # (D_out, D_in+nbf, TC)

    # i-outer / o-inner: each x slab is loaded + upcast exactly once and
    # reused for all D_out accumulators (cuts vld / cast traffic ~D_out x).
    acc = [None] * d_out
    for i in range(d_in):
        xi = x_ref[i].astype(jnp.float32)                  # (TN, TC)
        for o in range(d_out):
            term = xi * p[o, i:i + 1]                      # (TN,TC) * (1,TC)
            acc[o] = term if acc[o] is None else acc[o] + term

    for o in range(d_out):
        y = acc[o] + p[o, d_in:d_in + 1]                   # + bias
        if act:
            # TODO(synk): if v7x profiling shows this flips the kernel to
            # EUP-bound, replace jnp.tanh with a VPU rational approximation.
            y = y + jnp.tanh(y) * p[o, d_in + 1:d_in + 2]  # tanh(factor) precomputed
        o_ref[o] = y.astype(o_ref.dtype)


# ----------------------------------------------------------------------------
# Tiling / VMEM budgeting
# ----------------------------------------------------------------------------
def _vmem_budgets():
    """(block budget, vmem_limit_bytes) per TPU generation."""
    try:
        cap = pltpu.get_tpu_info().vmem_capacity_bytes
    except Exception:
        cap = 64 << 20                       # conservative (v7x-sized)
    if cap >= (96 << 20):                    # v5e / v6e: 128 MiB physical VMEM
        return 44 << 20, 64 << 20
    return 20 << 20, 32 << 20                # v7x: 64 MiB per TensorCore


def _pick_tiles(n, c, d_in, d_out, nbf, itemsize, block_budget):
    itemsize = int(itemsize)
    n_pack = max(8, 32 // itemsize)          # sublane packing: f32=8, bf16=16, i8=32

    # Lane (channel) tile: full extent when small; otherwise a 128-multiple
    # so an awkward large C can never blow the VMEM limit (tail block padded).
    tile_c = c if c <= 512 else 512

    # Sublane (N) tile from the double-buffered VMEM block budget.
    fixed = 2 * d_out * (d_in + nbf) * tile_c * 4            # f32 param block
    per_row = 2 * (d_in + d_out) * tile_c * itemsize         # x + out blocks
    rows = (block_budget - fixed) // per_row
    rows = max(int(rows), n_pack)
    tile_n = min(n, rows)

    # Guarantee a few grid steps: keeps v7x's 2nd TensorCore busy and gives
    # the double-buffered pipeline something to overlap.
    if pl.cdiv(c, tile_c) * pl.cdiv(n, max(tile_n, 1)) < 4:
        want = -(-n // 4)                                     # ceil(n / 4)
        want = max(n_pack, ((want + n_pack - 1) // n_pack) * n_pack)
        tile_n = min(tile_n, want)

    if tile_n < n:
        tile_n = max(n_pack, (tile_n // n_pack) * n_pack)
    tile_n = min(tile_n, n)
    if n <= n_pack:
        tile_n = n                                            # full-extent block
    return tile_n, tile_c


# ----------------------------------------------------------------------------
# Kernel-layout API (preferred: amortizes relayout across stacked layers)
# ----------------------------------------------------------------------------
def cdf_layer_apply(x_k, p_k, *, act, out_dtype=None):
    """Apply one CDF layer on activations already in kernel layout.

    x_k : (D_in, N, C)           channels on lanes
    p_k : (D_out, D_in+nbf, C)   from prepare_params()
    returns (D_out, N, C)
    """
    d_in, n, c = x_k.shape
    d_out, cols, _ = p_k.shape
    nbf = cols - d_in
    out_dtype = out_dtype or x_k.dtype

    block_budget, vmem_limit = _vmem_budgets()
    tile_n, tile_c = _pick_tiles(n, c, d_in, d_out, nbf,
                                 x_k.dtype.itemsize, block_budget)
    grid = (pl.cdiv(c, tile_c), pl.cdiv(n, tile_n))   # C outer, N inner

    flops = 2 * n * c * d_in * d_out + (4 if act else 1) * n * c * d_out
    transcendentals = n * c * d_out if act else 0
    bytes_accessed = int((x_k.size + n * c * d_out) * x_k.dtype.itemsize
                         + p_k.size * p_k.dtype.itemsize)

    return pl.pallas_call(
        partial(_cdf_kernel, d_in=d_in, d_out=d_out, act=act),
        out_shape=jax.ShapeDtypeStruct((d_out, n, c), out_dtype),
        grid=grid,
        in_specs=[
            # Param block index constant across the inner (N) axis -> no re-DMA.
            pl.BlockSpec((d_out, cols, tile_c), lambda ci, ni: (0, 0, ci)),
            pl.BlockSpec((d_in, tile_n, tile_c), lambda ci, ni: (0, ni, ci)),
        ],
        out_specs=pl.BlockSpec((d_out, tile_n, tile_c), lambda ci, ni: (0, ni, ci)),
        compiler_params=pltpu.CompilerParams(
            dimension_semantics=("parallel", "parallel"),
            vmem_limit_bytes=vmem_limit,
        ),
        cost_estimate=pl.CostEstimate(
            flops=flops,
            transcendentals=transcendentals,
            bytes_accessed=bytes_accessed,
        ),
    )(p_k, x_k)


def prepare_params(weight, bias, factor=None, act=True, fold=1):
    """PyTorch-layout params -> kernel parameter block (D_out, D_in+nbf, fold*C).

    softplus(weight) and tanh(factor) are computed once here (not per grid
    step in the kernel) and merged with the bias so the kernel issues a single
    small parameter DMA per channel tile.
    """
    w_sp = jax.nn.softplus(weight[0].astype(jnp.float32))       # (C, D_out, D_in)
    w_k = jnp.transpose(w_sp, (1, 2, 0))                        # (D_out, D_in, C)
    b_k = jnp.transpose(bias[0, :, :, 0].astype(jnp.float32), (1, 0))[:, None, :]
    parts = [w_k, b_k]
    if act:
        tf = jnp.tanh(jnp.transpose(factor[0, :, :, 0].astype(jnp.float32), (1, 0)))
        parts.append(tf[:, None, :])
    p_k = jnp.concatenate(parts, axis=1)                        # (D_out, D_in+nbf, C)
    if fold > 1:
        p_k = jnp.tile(p_k, (1, 1, fold))                       # match folded lanes
    return p_k


def _lane_fold(n, c):
    """Smallest g with (g*C) % 128 == 0 and N % g == 0 (else 1): keeps the
    lane axis dense when C is small or not a multiple of 128."""
    if c % 128 == 0:
        return 1
    g = 128 // math.gcd(c, 128)
    if g > 1 and n % g == 0 and g * c <= 4096:
        return g
    return 1


def to_kernel_layout(x, fold=1):
    """(N, C, D, 1) -> (D, N/fold, fold*C).  Paid once at the model boundary."""
    n, c, d, _ = x.shape
    x_k = jnp.transpose(x[..., 0], (2, 0, 1))                   # (D, N, C)
    if fold > 1:
        x_k = x_k.reshape(d, n // fold, fold * c)
    return x_k


def from_kernel_layout(y_k, n, c, fold=1):
    """(D_out, N/fold, fold*C) -> (N, C, D_out, 1).  Paid once at the boundary."""
    d_out = y_k.shape[0]
    if fold > 1:
        y_k = y_k.reshape(d_out, n, c)
    return jnp.transpose(y_k, (1, 2, 0))[..., None]


# ----------------------------------------------------------------------------
# PyTorch-layout wrappers
# ----------------------------------------------------------------------------
def cdf_layer_forward(x, weight, bias, factor=None, act=True):
    """Drop-in equivalent of CDFLayer.forward (PyTorch layouts in and out).

    NOTE: for stacked CDF layers prefer cdf_stack_forward / cdf_layer_apply,
    which pay the layout conversion only once per model call.
    """
    n, c, _, _ = x.shape
    fold = _lane_fold(n, c)
    x_k = to_kernel_layout(x, fold)
    p_k = prepare_params(weight, bias, factor, act=act, fold=fold)
    y_k = cdf_layer_apply(x_k, p_k, act=act, out_dtype=x.dtype)
    return from_kernel_layout(y_k, n, c, fold)


def cdf_stack_forward(x, layer_params):
    """Apply a stack of CDF layers with a single boundary relayout on each
    side; intermediate activations stay in the kernel's (D, N, C) layout
    (removes the per-layer transpose passes flagged by the perf review).

    layer_params: list of (weight, bias, factor_or_None, act_flag).
    """
    n, c = x.shape[0], x.shape[1]
    fold = _lane_fold(n, c)
    x_k = to_kernel_layout(x, fold)
    for (w, b, f, a) in layer_params:
        p_k = prepare_params(w, b, f, act=a, fold=fold)
        x_k = cdf_layer_apply(x_k, p_k, act=a, out_dtype=x.dtype)
    return from_kernel_layout(x_k, n, c, fold)


# ----------------------------------------------------------------------------
# Reference + init
# ----------------------------------------------------------------------------
def cdf_layer_reference(x, weight, bias, factor=None, act=True):
    """Pure-JAX reference replicating the PyTorch forward exactly."""
    w_sp = jax.nn.softplus(weight)                               # (1, C, D_out, D_in)
    y = jnp.einsum("zcoi,ncid->ncod", w_sp, x) + bias
    if act:
        return y + jnp.tanh(y) * jnp.tanh(factor)
    return y


def init_params(key, channels, in_dim, out_dim, init_scale, act=True,
                dtype=jnp.float32):
    """Deterministic parameter init mirroring CDFLayer.__init__."""
    weight_init_val = float(np.log(np.expm1(1.0 / init_scale / out_dim)))
    weight = jnp.full((1, channels, out_dim, in_dim), weight_init_val, dtype=dtype)
    bias = jax.random.uniform(key, (1, channels, out_dim, 1),
                              minval=-0.5, maxval=0.5, dtype=dtype)
    factor = jnp.zeros((1, channels, out_dim, 1), dtype=dtype) if act else None
    return weight, bias, factor


# ----------------------------------------------------------------------------
# Demo / correctness check
# ----------------------------------------------------------------------------
if __name__ == "__main__":
    INIT_SCALE = 10.0
    key = jax.random.PRNGKey(0)
    k_x, k_b1, k_b2, k_b3 = jax.random.split(key, 4)

    # ---- standalone layer, C not a multiple of 128 (exercises lane folding)
    N, C, D_IN, D_OUT = 128, 96, 3, 3
    x = jax.random.normal(k_x, (N, C, D_IN, 1), dtype=jnp.float32)
    w1, b1, f1 = init_params(k_b1, C, D_IN, D_OUT, INIT_SCALE, act=True)

    out = jax.block_until_ready(cdf_layer_forward(x, w1, b1, f1, act=True))
    ref = cdf_layer_reference(x, w1, b1, f1, act=True)
    np.testing.assert_allclose(np.asarray(out), np.asarray(ref),
                               rtol=1e-5, atol=1e-5)
    assert out.shape == (N, C, D_OUT, 1)

    out_na = jax.block_until_ready(cdf_layer_forward(x, w1, b1, None, act=False))
    ref_na = cdf_layer_reference(x, w1, b1, None, act=False)
    np.testing.assert_allclose(np.asarray(out_na), np.asarray(ref_na),
                               rtol=1e-5, atol=1e-5)

    # ---- stacked layers (1 -> 3 -> 3 -> 1) with layout carried across layers
    Ns, Cs = 64, 96
    xs = jax.random.normal(k_x, (Ns, Cs, 1, 1), dtype=jnp.float32)
    wA, bA, fA = init_params(k_b1, Cs, 1, 3, INIT_SCALE, act=True)
    wB, bB, fB = init_params(k_b2, Cs, 3, 3, INIT_SCALE, act=True)
    wC, bC, _ = init_params(k_b3, Cs, 3, 1, INIT_SCALE, act=False)
    stack = [(wA, bA, fA, True), (wB, bB, fB, True), (wC, bC, None, False)]

    out_s = jax.block_until_ready(cdf_stack_forward(xs, stack))
    ref_s = cdf_layer_reference(xs, wA, bA, fA, act=True)
    ref_s = cdf_layer_reference(ref_s, wB, bB, fB, act=True)
    ref_s = cdf_layer_reference(ref_s, wC, bC, None, act=False)
    np.testing.assert_allclose(np.asarray(out_s), np.asarray(ref_s),
                               rtol=1e-5, atol=1e-5)
    assert out_s.shape == (Ns, Cs, 1, 1)

    print("KERNEL_OK")
</pallas_src>

<mosaic_0001>
module attributes {stable_mosaic.version = 11 : i64} {
  func.func @_cdf_kernel(%arg0: i32, %arg1: i32, %arg2: memref<3x5x384xf32, #tpu.memory_space<vmem>>, %arg3: memref<3x8x384xf32, #tpu.memory_space<vmem>>, %arg4: memref<3x8x384xf32, #tpu.memory_space<vmem>>) attributes {dimension_semantics = [#tpu.dimension_semantics<parallel>, #tpu.dimension_semantics<parallel>], iteration_bounds = array<i64: 1, 4>, scalar_prefetch = 0 : i64, scratch_operands = 0 : i64, tpu.core_type = #tpu.core_type<tc>, window_params = [{transform_indices = @transform_0, window_bounds = array<i64: 3, 5, 384>}, {transform_indices = @transform_1, window_bounds = array<i64: 3, 8, 384>}, {transform_indices = @transform_2, window_bounds = array<i64: 3, 8, 384>}]} {
    %c0 = arith.constant 0 : index
    %c0_0 = arith.constant 0 : index
    %c0_1 = arith.constant 0 : index
    %0 = vector.load %arg2[%c0, %c0_0, %c0_1] : memref<3x5x384xf32, #tpu.memory_space<vmem>>, vector<3x5x384xf32>
    %c0_2 = arith.constant 0 : index
    %c0_3 = arith.constant 0 : index
    %c0_4 = arith.constant 0 : index
    %1 = vector.load %arg3[%c0_2, %c0_3, %c0_4] : memref<3x8x384xf32, #tpu.memory_space<vmem>>, vector<1x8x384xf32>
    %2 = vector.shape_cast %1 : vector<1x8x384xf32> to vector<8x384xf32>
    %3 = vector.extract_strided_slice %0 {offsets = [0, 0, 0], sizes = [1, 1, 384], strides = [1, 1, 1]} : vector<3x5x384xf32> to vector<1x1x384xf32>
    %4 = vector.shape_cast %3 : vector<1x1x384xf32> to vector<1x384xf32>
    %5 = vector.broadcast %4 : vector<1x384xf32> to vector<8x384xf32>
    %6 = arith.mulf %2, %5 : vector<8x384xf32>
    %7 = vector.extract_strided_slice %0 {offsets = [1, 0, 0], sizes = [1, 1, 384], strides = [1, 1, 1]} : vector<3x5x384xf32> to vector<1x1x384xf32>
    %8 = vector.shape_cast %7 : vector<1x1x384xf32> to vector<1x384xf32>
    %9 = vector.broadcast %8 : vector<1x384xf32> to vector<8x384xf32>
    %10 = arith.mulf %2, %9 : vector<8x384xf32>
    %11 = vector.extract_strided_slice %0 {offsets = [2, 0, 0], sizes = [1, 1, 384], strides = [1, 1, 1]} : vector<3x5x384xf32> to vector<1x1x384xf32>
    %12 = vector.shape_cast %11 : vector<1x1x384xf32> to vector<1x384xf32>
    %13 = vector.broadcast %12 : vector<1x384xf32> to vector<8x384xf32>
    %14 = arith.mulf %2, %13 : vector<8x384xf32>
    %c1 = arith.constant 1 : index
    %c0_5 = arith.constant 0 : index
    %c0_6 = arith.constant 0 : index
    %15 = vector.load %arg3[%c1, %c0_5, %c0_6] : memref<3x8x384xf32, #tpu.memory_space<vmem>>, vector<1x8x384xf32>
    %16 = vector.shape_cast %15 : vector<1x8x384xf32> to vector<8x384xf32>
    %17 = vector.extract_strided_slice %0 {offsets = [0, 1, 0], sizes = [1, 1, 384], strides = [1, 1, 1]} : vector<3x5x384xf32> to vector<1x1x384xf32>
    %18 = vector.shape_cast %17 : vector<1x1x384xf32> to vector<1x384xf32>
    %19 = vector.broadcast %18 : vector<1x384xf32> to vector<8x384xf32>
    %20 = arith.mulf %16, %19 : vector<8x384xf32>
    %21 = arith.addf %6, %20 : vector<8x384xf32>
    %22 = vector.extract_strided_slice %0 {offsets = [1, 1, 0], sizes = [1, 1, 384], strides = [1, 1, 1]} : vector<3x5x384xf32> to vector<1x1x384xf32>
    %23 = vector.shape_cast %22 : vector<1x1x384xf32> to vector<1x384xf32>
    %24 = vector.broadcast %23 : vector<1x384xf32> to vector<8x384xf32>
    %25 = arith.mulf %16, %24 : vector<8x384xf32>
    %26 = arith.addf %10, %25 : vector<8x384xf32>
    %27 = vector.extract_strided_slice %0 {offsets = [2, 1, 0], sizes = [1, 1, 384], strides = [1, 1, 1]} : vector<3x5x384xf32> to vector<1x1x384xf32>
    %28 = vector.shape_cast %27 : vector<1x1x384xf32> to vector<1x384xf32>
    %29 = vector.broadcast %28 : vector<1x384xf32> to vector<8x384xf32>
    %30 = arith.mulf %16, %29 : vector<8x384xf32>
    %31 = arith.addf %14, %30 : vector<8x384xf32>
    %c2 = arith.constant 2 : index
    %c0_7 = arith.constant 0 : index
    %c0_8 = arith.constant 0 : index
    %32 = vector.load %arg3[%c2, %c0_7, %c0_8] : memref<3x8x384xf32, #tpu.memory_space<vmem>>, vector<1x8x384xf32>
    %33 = vector.shape_cast %32 : vector<1x8x384xf32> to vector<8x384xf32>
    %34 = vector.extract_strided_slice %0 {offsets = [0, 2, 0], sizes = [1, 1, 384], strides = [1, 1, 1]} : vector<3x5x384xf32> to vector<1x1x384xf32>
    %35 = vector.shape_cast %34 : vector<1x1x384xf32> to vector<1x384xf32>
    %36 = vector.broadcast %35 : vector<1x384xf32> to vector<8x384xf32>
    %37 = arith.mulf %33, %36 : vector<8x384xf32>
    %38 = arith.addf %21, %37 : vector<8x384xf32>
    %39 = vector.extract_strided_slice %0 {offsets = [1, 2, 0], sizes = [1, 1, 384], strides = [1, 1, 1]} : vector<3x5x384xf32> to vector<1x1x384xf32>
    %40 = vector.shape_cast %39 : vector<1x1x384xf32> to vector<1x384xf32>
    %41 = vector.broadcast %40 : vector<1x384xf32> to vector<8x384xf32>
    %42 = arith.mulf %33, %41 : vector<8x384xf32>
    %43 = arith.addf %26, %42 : vector<8x384xf32>
    %44 = vector.extract_strided_slice %0 {offsets = [2, 2, 0], sizes = [1, 1, 384], strides = [1, 1, 1]} : vector<3x5x384xf32> to vector<1x1x384xf32>
    %45 = vector.shape_cast %44 : vector<1x1x384xf32> to vector<1x384xf32>
    %46 = vector.broadcast %45 : vector<1x384xf32> to vector<8x384xf32>
    %47 = arith.mulf %33, %46 : vector<8x384xf32>
    %48 = arith.addf %31, %47 : vector<8x384xf32>
    %49 = vector.extract_strided_slice %0 {offsets = [0, 3, 0], sizes = [1, 1, 384], strides = [1, 1, 1]} : vector<3x5x384xf32> to vector<1x1x384xf32>
    %50 = vector.shape_cast %49 : vector<1x1x384xf32> to vector<1x384xf32>
    %51 = vector.broadcast %50 : vector<1x384xf32> to vector<8x384xf32>
    %52 = arith.addf %38, %51 : vector<8x384xf32>
    %53 = math.tanh %52 : vector<8x384xf32>
    %54 = vector.extract_strided_slice %0 {offsets = [0, 4, 0], sizes = [1, 1, 384], strides = [1, 1, 1]} : vector<3x5x384xf32> to vector<1x1x384xf32>
    %55 = vector.shape_cast %54 : vector<1x1x384xf32> to vector<1x384xf32>
    %56 = vector.broadcast %55 : vector<1x384xf32> to vector<8x384xf32>
    %57 = arith.mulf %53, %56 : vector<8x384xf32>
    %58 = arith.addf %52, %57 : vector<8x384xf32>
    %c0_9 = arith.constant 0 : index
    %c0_10 = arith.constant 0 : index
    %c0_11 = arith.constant 0 : index
    %59 = vector.load %arg4[%c0_9, %c0_10, %c0_11] : memref<3x8x384xf32, #tpu.memory_space<vmem>>, vector<1x8x384xf32>
    %60 = vector.shape_cast %59 : vector<1x8x384xf32> to vector<8x384xf32>
    %61 = vector.shape_cast %58 : vector<8x384xf32> to vector<1x8x384xf32>
    tpu.vector_store %arg4[%c0_9, %c0_10, %c0_11], %61 {strides = array<i32>} : memref<3x8x384xf32, #tpu.memory_space<vmem>>, vector<1x8x384xf32>,
    %62 = vector.extract_strided_slice %0 {offsets = [1, 3, 0], sizes = [1, 1, 384], strides = [1, 1, 1]} : vector<3x5x384xf32> to vector<1x1x384xf32>
    %63 = vector.shape_cast %62 : vector<1x1x384xf32> to vector<1x384xf32>
    %64 = vector.broadcast %63 : vector<1x384xf32> to vector<8x384xf32>
    %65 = arith.addf %43, %64 : vector<8x384xf32>
    %66 = math.tanh %65 : vector<8x384xf32>
    %67 = vector.extract_strided_slice %0 {offsets = [1, 4, 0], sizes = [1, 1, 384], strides = [1, 1, 1]} : vector<3x5x384xf32> to vector<1x1x384xf32>
    %68 = vector.shape_cast %67 : vector<1x1x384xf32> to vector<1x384xf32>
    %69 = vector.broadcast %68 : vector<1x384xf32> to vector<8x384xf32>
    %70 = arith.mulf %66, %69 : vector<8x384xf32>
    %71 = arith.addf %65, %70 : vector<8x384xf32>
    %c1_12 = arith.constant 1 : index
    %c0_13 = arith.constant 0 : index
    %c0_14 = arith.constant 0 : index
    %72 = vector.load %arg4[%c1_12, %c0_13, %c0_14] : memref<3x8x384xf32, #tpu.memory_space<vmem>>, vector<1x8x384xf32>
    %73 = vector.shape_cast %72 : vector<1x8x384xf32> to vector<8x384xf32>
    %74 = vector.shape_cast %71 : vector<8x384xf32> to vector<1x8x384xf32>
    tpu.vector_store %arg4[%c1_12, %c0_13, %c0_14], %74 {strides = array<i32>} : memref<3x8x384xf32, #tpu.memory_space<vmem>>, vector<1x8x384xf32>,
    %75 = vector.extract_strided_slice %0 {offsets = [2, 3, 0], sizes = [1, 1, 384], strides = [1, 1, 1]} : vector<3x5x384xf32> to vector<1x1x384xf32>
    %76 = vector.shape_cast %75 : vector<1x1x384xf32> to vector<1x384xf32>
    %77 = vector.broadcast %76 : vector<1x384xf32> to vector<8x384xf32>
    %78 = arith.addf %48, %77 : vector<8x384xf32>
    %79 = math.tanh %78 : vector<8x384xf32>
    %80 = vector.extract_strided_slice %0 {offsets = [2, 4, 0], sizes = [1, 1, 384], strides = [1, 1, 1]} : vector<3x5x384xf32> to vector<1x1x384xf32>
    %81 = vector.shape_cast %80 : vector<1x1x384xf32> to vector<1x384xf32>
    %82 = vector.broadcast %81 : vector<1x384xf32> to vector<8x384xf32>
    %83 = arith.mulf %79, %82 : vector<8x384xf32>
    %84 = arith.addf %78, %83 : vector<8x384xf32>
    %c2_15 = arith.constant 2 : index
    %c0_16 = arith.constant 0 : index
    %c0_17 = arith.constant 0 : index
    %85 = vector.load %arg4[%c2_15, %c0_16, %c0_17] : memref<3x8x384xf32, #tpu.memory_space<vmem>>, vector<1x8x384xf32>
    %86 = vector.shape_cast %85 : vector<1x8x384xf32> to vector<8x384xf32>
    %87 = vector.shape_cast %84 : vector<8x384xf32> to vector<1x8x384xf32>
    tpu.vector_store %arg4[%c2_15, %c0_16, %c0_17], %87 {strides = array<i32>} : memref<3x8x384xf32, #tpu.memory_space<vmem>>, vector<1x8x384xf32>,
    return
  }
  func.func @transform_0(%arg0: i32, %arg1: i32) -> (i32, i32, i32) {
    %c0_i32 = arith.constant 0 : i32
    %c0_i32_0 = arith.constant 0 : i32
    %c0_i32_1 = arith.constant 0 : i32
    return %c0_i32, %c0_i32_0, %arg0 : i32, i32, i32
  }
  func.func @transform_1(%arg0: i32, %arg1: i32) -> (i32, i32, i32) {
    %c0_i32 = arith.constant 0 : i32
    %c0_i32_0 = arith.constant 0 : i32
    return %c0_i32, %arg1, %arg0 : i32, i32, i32
  }
  func.func @transform_2(%arg0: i32, %arg1: i32) -> (i32, i32, i32) {
    %c0_i32 = arith.constant 0 : i32
    %c0_i32_0 = arith.constant 0 : i32
    return %c0_i32, %arg1, %arg0 : i32, i32, i32
  }
}

</mosaic_0001>

<llo_original>
// kernel: tpu_custom_call.1
$region0: #{tpu_custom_call.1}
  #allocation0 [shape = 'u32[]', space=smem, size = 0x4, offset = 0x4, fixed_abs, tag = 'smem constant byte address 0x4 - core index']
  #allocation1 [shape = 'u32[144,128]{1,0:T(1,128)}', space=vmem, size = 0x12000, scoped, tag = 'internal scratch']
  %s0 = inlined_call_operand.vmem [shape: f32[3,5,384], index: 0, kind: input, shape index: {}]
  %s1 = inlined_call_operand.hbm [shape: f32[3,32,384], index: 1, kind: input, shape index: {}]
  %s2 = inlined_call_operand.hbm [shape: f32[3,32,384], index: 2, kind: output, shape index: {}]
  %s3 = sld [smem:[#allocation0]]
  $region45: #{tpu_custom_call.1} parent=0
    _
  %s5 = ssub.s32 1, %s3
  %s6 = scalar_select 0, %s5, %s3
  $region1: #{tpu_custom_call.1} parent=0
    #allocation2 [shape = 'u8[73728]{0}', space=vmem, size = 0x12000, scoped, tag = 'input window, operand 1']
    #allocation3 [shape = 's32[2]{0}', space=sflag, size = 0x8, scoped, tag = 'scoped memory for tpu_custom_call.1']
    #allocation4 [shape = 's32[2]{0}', space=sflag, size = 0x8, scoped, tag = 'scoped memory for tpu_custom_call.1']
    #allocation5 [shape = 'u8[73728]{0}', space=vmem, size = 0x12000, scoped, tag = 'output window, operand 0']
    %7 = vsyncpa [#allocation3], 0
    %s8 = scalar_lea.sflag [#allocation3], 1
    %9 = vsyncpa %s8, 0
    %10 = vsyncpa [#allocation4], 0
    %s11 = scalar_lea.sflag [#allocation4], 1
    %12 = vsyncpa %s11, 0
    loop: start=0, step=1, limit=6
    $region2: #{tpu_custom_call.1} parent=1 // loop_pre_header
      _
    $region3: #{tpu_custom_call.1} parent=1 // loop_header
      %s14 = sphi 0, %s18
      %p15 = scmp.ge.s32.totalorder %s14, 6
      %s21 = sphi 0, %s33
      %s22 = sphi 0, %s29
      %s23 = sphi 0, %s21
      %s24 = sphi 0, %s22
      %s25 = sphi 0, %s23
      %s26 = sphi 0, %s24
      %s36 = sphi 0, %s38
      %s39 = sphi 0, %s36
      %s40 = sphi 0, %s39
      %s56 = sphi 0, %s40
      %s64 = sphi 0, %s66
      %s67 = sphi 0, %s64
      %s68 = sphi 0, %s67
      %s84 = sphi 0, %s68
      %s92 = sphi 0, %s94
      %s95 = sphi 0, %s92
      %s96 = sphi 0, %s95
      %s112 = sphi 0, %s96
    $region4: #{tpu_custom_call.1} parent=1 // loop_header_branch
      %17 = sbr.rel (%p15) target = $region8
    $region5: #{tpu_custom_call.1} parent=1 // loop_body
      %s19 = ssub.s32 %s14, 1
      %s20 = ssub.s32 %s14, 2
      %s27 = sadd.s32 1, %s22
      %p28 = scmp.ge.s32.totalorder %s27, 4
      %s29 = scalar_select %p28, 0, %s27
      %s30 = sadd.s32 1, %s21
      %s31 = scalar_select %p28, %s30, %s21
      %p32 = scmp.ge.s32.totalorder %s31, 1
      %s33 = scalar_select %p32, 0, %s31
      %s34 = ssub.s32 %s21, %s33
      %p35 = scmp.eq.s32.totalorder %s34, 0
      %s37 = sadd.s32 %s36, 1
      %s38 = scalar_select %p35, %s36, %s37
      %p41 = pneg %p35
      %p42 = scmp.eq.s32.totalorder %s14, 3
      %p43 = por %p41, %p42
      %p44 = scmp.ne.s32.totalorder %s36, %s39
      %p45 = scmp.eq.s32.totalorder %s14, 0
      %p46 = por %p44, %p45
      %p47 = scmp.ne.s32.totalorder %s36, %s39
      %p48 = scmp.eq.s32.totalorder %s19, 3
      %p49 = por %p47, %p48
      %p50 = scmp.ne.s32.totalorder %s39, %s40
      %p51 = scmp.eq.s32.totalorder %s19, 0
      %p52 = por %p50, %p51
      %p53 = scmp.ne.s32.totalorder %s39, %s40
      %p54 = scmp.eq.s32.totalorder %s20, 3
      %p55 = por %p53, %p54
      %p57 = scmp.ne.s32.totalorder %s40, %s56
      %p58 = scmp.eq.s32.totalorder %s20, 0
      %p59 = por %p57, %p58
      %s60 = ssub.s32 %s22, %s29
      %s61 = ssub.s32 %s21, %s33
      %s62 = sor.u32 %s60, %s61
      %p63 = scmp.eq.s32.totalorder %s62, 0
      %s65 = sadd.s32 %s64, 1
      %s66 = scalar_select %p63, %s64, %s65
      %p69 = pneg %p63
      %p70 = scmp.eq.s32.totalorder %s14, 3
      %p71 = por %p69, %p70
      %p72 = scmp.ne.s32.totalorder %s64, %s67
      %p73 = scmp.eq.s32.totalorder %s14, 0
      %p74 = por %p72, %p73
      %p75 = scmp.ne.s32.totalorder %s64, %s67
      %p76 = scmp.eq.s32.totalorder %s19, 3
      %p77 = por %p75, %p76
      %p78 = scmp.ne.s32.totalorder %s67, %s68
      %p79 = scmp.eq.s32.totalorder %s19, 0
      %p80 = por %p78, %p79
      %p81 = scmp.ne.s32.totalorder %s67, %s68
      %p82 = scmp.eq.s32.totalorder %s20, 3
      %p83 = por %p81, %p82
      %p85 = scmp.ne.s32.totalorder %s68, %s84
      %p86 = scmp.eq.s32.totalorder %s20, 0
      %p87 = por %p85, %p86
      %s88 = ssub.s32 %s22, %s29
      %s89 = ssub.s32 %s21, %s33
      %s90 = sor.u32 %s88, %s89
      %p91 = scmp.eq.s32.totalorder %s90, 0
      %s93 = sadd.s32 %s92, 1
      %s94 = scalar_select %p91, %s92, %s93
      %p97 = pneg %p91
      %p98 = scmp.eq.s32.totalorder %s14, 3
      %p99 = por %p97, %p98
      %p100 = scmp.ne.s32.totalorder %s92, %s95
      %p101 = scmp.eq.s32.totalorder %s14, 0
      %p102 = por %p100, %p101
      %p103 = scmp.ne.s32.totalorder %s92, %s95
      %p104 = scmp.eq.s32.totalorder %s19, 3
      %p105 = por %p103, %p104
      %p106 = scmp.ne.s32.totalorder %s95, %s96
      %p107 = scmp.eq.s32.totalorder %s19, 0
      %p108 = por %p106, %p107
      %p109 = scmp.ne.s32.totalorder %s95, %s96
      %p110 = scmp.eq.s32.totalorder %s20, 3
      %p111 = por %p109, %p110
      %p113 = scmp.ne.s32.totalorder %s96, %s112
      %p114 = scmp.eq.s32.totalorder %s20, 0
      %p115 = por %p113, %p114
      %p116 = scmp.le.s32.totalorder 1, %s14
      %p117 = scmp.lt.s32.totalorder %s14, 5
      %p118 = pnand %p116, %p117
      %p119 = pneg %p118
      // Predicated region
      $region9: #{tpu_custom_call.1} parent=5 // pred_check
        _
      $region10: #{tpu_custom_call.1} parent=5 // pred_check_branch
        %121 = sbr.rel (%p118) target = $region12
      $region11: #{tpu_custom_call.1} parent=5 // pred_region
        %s122 = ssub.s32 %s14, 1
        // Predicated region
        $region13: #{tpu_custom_call.1} parent=11 // pred_check
          %p123 = pneg %p52
        $region14: #{tpu_custom_call.1} parent=11 // pred_check_branch
          %125 = sbr.rel (%p123) target = $region16
        $region15: #{tpu_custom_call.1} parent=11 // pred_region
          %s126 = smul.u32 3, %s23
          %p127 = scmp.lt.s32.totalorder %s126, 2
          %s128 = scalar_select %p127, %s126, 2
          %s129 = smul.addr %s128, 8
          %s130 = scalar_lea.vmem %s0, %s129
          %s131 = smul.u32 3, %s23
        $region16: #{tpu_custom_call.1} parent=11 // pred_fallthru
          _
      $region12: #{tpu_custom_call.1} parent=5 // pred_fallthru
        _
      %p132 = scmp.lt.s32.totalorder %s14, 4
      // Predicated region
      $region17: #{tpu_custom_call.1} parent=5 // pred_check
        %p133 = pneg %p132
      $region18: #{tpu_custom_call.1} parent=5 // pred_check_branch
        %135 = sbr.rel (%p133) target = $region20
      $region19: #{tpu_custom_call.1} parent=5 // pred_region
        // Predicated region
        $region21: #{tpu_custom_call.1} parent=19 // pred_check
          %p136 = pneg %p74
        $region22: #{tpu_custom_call.1} parent=19 // pred_check_branch
          %138 = sbr.rel (%p136) target = $region24
        $region23: #{tpu_custom_call.1} parent=19 // pred_region
          %s139 = sand.u32 %s64, 1
          %s140 = scalar_lea.sflag [#allocation3], %s139
          %s141 = sand.u32 %s64, 1
          %s142 = smul.addr %s141, 72
          %s143 = scalar_lea.vmem [#allocation2], %s142
          %s144 = smul.u32 3, %s21
          %s146 = ssub.s32 1152, 1152
          %147 = vsyncadd %s140, %s146
          %s148 = smul.addr %s22, 3
          %s149 = sadd.s32 %s144, %s148
          %s150 = smul.addr %s149, 128
          %s151 = scalar_lea.hbm %s1, %s150
          %s152 = sshll.u32 %s143, 4
          %s153 = int_to_ptr.vmem [resolvable:$true] %s152
          %158 = dma.hbm_to_vmem [thread:$0]  %s151, 1152, %s153, %s140, 1536, 384, 24
        $region24: #{tpu_custom_call.1} parent=19 // pred_fallthru
          _
      $region20: #{tpu_custom_call.1} parent=5 // pred_fallthru
        _
      %p159 = scmp.le.s32.totalorder 1, %s14
      %p160 = scmp.lt.s32.totalorder %s14, 5
      %p161 = pnand %p159, %p160
      %p162 = pneg %p161
      // Predicated region
      $region25: #{tpu_custom_call.1} parent=5 // pred_check
        _
      $region26: #{tpu_custom_call.1} parent=5 // pred_check_branch
        %164 = sbr.rel (%p161) target = $region28
      $region27: #{tpu_custom_call.1} parent=5 // pred_region
        %s165 = ssub.s32 %s14, 1
        %s166 = sand.u32 %s67, 1
        %s167 = scalar_lea.sflag [#allocation3], %s166
        %s168 = sand.u32 %s67, 1
        %s169 = smul.addr %s168, 72
        %s170 = scalar_lea.vmem [#allocation2], %s169
        // Predicated region
        $region29: #{tpu_custom_call.1} parent=27 // pred_check
          %p171 = pneg %p80
        $region30: #{tpu_custom_call.1} parent=27 // pred_check_branch
          %173 = sbr.rel (%p171) target = $region32
        $region31: #{tpu_custom_call.1} parent=27 // pred_region
          %174 = dma.done %s167, 1152
        $region32: #{tpu_custom_call.1} parent=27 // pred_fallthru
          _
        %s175 = smul.u32 3, %s23
        %p176 = scmp.lt.s32.totalorder %s175, 2
        %s177 = scalar_select %p176, %s175, 2
        %s178 = smul.addr %s177, 8
        %s179 = scalar_lea.vmem %s0, %s178
        %p180 = pneg %p52
        %p181 = pneg %p49
        %s182 = sand.u32 %s67, 1
        %s183 = scalar_lea.sflag [#allocation3], %s182
        %s184 = sand.u32 %s67, 1
        %s185 = smul.addr %s184, 72
        %s186 = scalar_lea.vmem [#allocation2], %s185
        %p187 = pneg %p80
        %p188 = pneg %p77
        %p189 = pneg %p108
        %p190 = pneg %p105
        %s191 = sand.u32 %s95, 1
        %s192 = scalar_lea.sflag [#allocation4], %s191
        %s193 = sand.u32 %s95, 1
        %s194 = smul.addr %s193, 72
        %s195 = scalar_lea.vmem [#allocation5], %s194
        %s196 = smul.u32 3, %s23
        %p197 = scmp.lt.s32.totalorder %s196, 2
        %s198 = scalar_select %p197, %s196, 2
        %s199 = smul.addr %s198, 8
        %s200 = scalar_lea.vmem %s0, %s199
        %s201 = smul.u32 3, %s23
        %s202 = smul.u32 3, %s23
        %s203 = smul.u32 3, %s23
        %v204 = vld [vmem:[%s200] sm:$0x1f]
        %v205 = vld [vmem:[%s200 + $0x8] sm:$0x1f]
        %v206 = vld [vmem:[%s200 + $0x10] sm:$0x1f]
        %v207 = vld [vmem:[%s200 + $0x18] sm:$0x1f]
        %v208 = vld [vmem:[%s200 + $0x20] sm:$0x1f]
        %v209 = vld [vmem:[%s200 + $0x28] sm:$0x1f]
        %v210 = vld [vmem:[%s200 + $0x30] sm:$0x1f]
        %v211 = vld [vmem:[%s200 + $0x38] sm:$0x1f]
        %v212 = vld [vmem:[%s200 + $0x40] sm:$0x1f]
        %v213 = vld [vmem:[%s170] sm:$0xff]
        %v214 = vld [vmem:[%s170 + $0x8] sm:$0xff]
        %v215 = vld [vmem:[%s170 + $0x10] sm:$0xff]
        %v216 = vlaneseq
        %v217 = vshrl.u32 %v216, 7
        %v218 = vsub.s32 0, %v217
        %v219 = vrot.slane %v204, %v218
        %v220 = vlaneseq
        %v221 = vshrl.u32 %v220, 7
        %v222 = vsub.s32 0, %v221
        %v223 = vrot.slane %v205, %v222
        %v224 = vlaneseq
        %v225 = vshrl.u32 %v224, 7
        %v226 = vsub.s32 0, %v225
        %v227 = vrot.slane %v206, %v226
        %v228 = vmul.f32 %v213, %v219
        %v229 = vmul.f32 %v214, %v223
        %v230 = vmul.f32 %v215, %v227
        %v231 = vlaneseq
        %v232 = vshrl.u32 %v231, 7
        %v233 = vsub.s32 0, %v232
        %v234 = vrot.slane %v207, %v233
        %v235 = vlaneseq
        %v236 = vshrl.u32 %v235, 7
        %v237 = vsub.s32 0, %v236
        %v238 = vrot.slane %v208, %v237
        %v239 = vlaneseq
        %v240 = vshrl.u32 %v239, 7
        %v241 = vsub.s32 0, %v240
        %v242 = vrot.slane %v209, %v241
        %v243 = vmul.f32 %v213, %v234
        %v244 = vmul.f32 %v214, %v238
        %v245 = vmul.f32 %v215, %v242
        %v246 = vlaneseq
        %v247 = vshrl.u32 %v246, 7
        %v248 = vsub.s32 0, %v247
        %v249 = vrot.slane %v210, %v248
        %v250 = vlaneseq
        %v251 = vshrl.u32 %v250, 7
        %v252 = vsub.s32 0, %v251
        %v253 = vrot.slane %v211, %v252
        %v254 = vlaneseq
        %v255 = vshrl.u32 %v254, 7
        %v256 = vsub.s32 0, %v255
        %v257 = vrot.slane %v212, %v256
        %v258 = vmul.f32 %v213, %v249
        %v259 = vmul.f32 %v214, %v253
        %v260 = vmul.f32 %v215, %v257
        %s261 = scalar_lea.vmem %s170, 24 [#allocation2]
        %v262 = vld [vmem:[%s261] sm:$0xff]
        %v263 = vld [vmem:[%s261 + $0x8] sm:$0xff]
        %v264 = vld [vmem:[%s261 + $0x10] sm:$0xff]
        %v265 = vlaneseq
        %v266 = vshrl.u32 %v265, 7
        %v267 = vsub.s32 1, %v266
        %v268 = vrot.slane %v204, %v267
        %v269 = vlaneseq
        %v270 = vshrl.u32 %v269, 7
        %v271 = vsub.s32 1, %v270
        %v272 = vrot.slane %v205, %v271
        %v273 = vlaneseq
        %v274 = vshrl.u32 %v273, 7
        %v275 = vsub.s32 1, %v274
        %v276 = vrot.slane %v206, %v275
        %v277 = vmul.f32 %v262, %v268
        %v278 = vmul.f32 %v263, %v272
        %v279 = vmul.f32 %v264, %v276
        %v280 = vadd.f32 %v228, %v277
        %v281 = vadd.f32 %v229, %v278
        %v282 = vadd.f32 %v230, %v279
        %v283 = vlaneseq
        %v284 = vshrl.u32 %v283, 7
        %v285 = vsub.s32 1, %v284
        %v286 = vrot.slane %v207, %v285
        %v287 = vlaneseq
        %v288 = vshrl.u32 %v287, 7
        %v289 = vsub.s32 1, %v288
        %v290 = vrot.slane %v208, %v289
        %v291 = vlaneseq
        %v292 = vshrl.u32 %v291, 7
        %v293 = vsub.s32 1, %v292
        %v294 = vrot.slane %v209, %v293
        %v295 = vmul.f32 %v262, %v286
        %v296 = vmul.f32 %v263, %v290
        %v297 = vmul.f32 %v264, %v294
        %v298 = vadd.f32 %v243, %v295
        %v299 = vadd.f32 %v244, %v296
        %v300 = vadd.f32 %v245, %v297
        %v301 = vlaneseq
        %v302 = vshrl.u32 %v301, 7
        %v303 = vsub.s32 1, %v302
        %v304 = vrot.slane %v210, %v303
        %v305 = vlaneseq
        %v306 = vshrl.u32 %v305, 7
        %v307 = vsub.s32 1, %v306
        %v308 = vrot.slane %v211, %v307
        %v309 = vlaneseq
        %v310 = vshrl.u32 %v309, 7
        %v311 = vsub.s32 1, %v310
        %v312 = vrot.slane %v212, %v311
        %v313 = vmul.f32 %v262, %v304
        %v314 = vmul.f32 %v263, %v308
        %v315 = vmul.f32 %v264, %v312
        %v316 = vadd.f32 %v258, %v313
        %v317 = vadd.f32 %v259, %v314
        %v318 = vadd.f32 %v260, %v315
        %s319 = scalar_lea.vmem %s170, 48 [#allocation2]
        %v320 = vld [vmem:[%s319] sm:$0xff]
        %v321 = vld [vmem:[%s319 + $0x8] sm:$0xff]
        %v322 = vld [vmem:[%s319 + $0x10] sm:$0xff]
        %v323 = vlaneseq
        %v324 = vshrl.u32 %v323, 7
        %v325 = vsub.s32 2, %v324
        %v326 = vrot.slane %v204, %v325
        %v327 = vlaneseq
        %v328 = vshrl.u32 %v327, 7
        %v329 = vsub.s32 2, %v328
        %v330 = vrot.slane %v205, %v329
        %v331 = vlaneseq
        %v332 = vshrl.u32 %v331, 7
        %v333 = vsub.s32 2, %v332
        %v334 = vrot.slane %v206, %v333
        %v335 = vmul.f32 %v320, %v326
        %v336 = vmul.f32 %v321, %v330
        %v337 = vmul.f32 %v322, %v334
        %v338 = vadd.f32 %v280, %v335
        %v339 = vadd.f32 %v281, %v336
        %v340 = vadd.f32 %v282, %v337
        %v341 = vlaneseq
        %v342 = vshrl.u32 %v341, 7
        %v343 = vsub.s32 2, %v342
        %v344 = vrot.slane %v207, %v343
        %v345 = vlaneseq
        %v346 = vshrl.u32 %v345, 7
        %v347 = vsub.s32 2, %v346
        %v348 = vrot.slane %v208, %v347
        %v349 = vlaneseq
        %v350 = vshrl.u32 %v349, 7
        %v351 = vsub.s32 2, %v350
        %v352 = vrot.slane %v209, %v351
        %v353 = vmul.f32 %v320, %v344
        %v354 = vmul.f32 %v321, %v348
        %v355 = vmul.f32 %v322, %v352
        %v356 = vadd.f32 %v298, %v353
        %v357 = vadd.f32 %v299, %v354
        %v358 = vadd.f32 %v300, %v355
        %v359 = vlaneseq
        %v360 = vshrl.u32 %v359, 7
        %v361 = vsub.s32 2, %v360
        %v362 = vrot.slane %v210, %v361
        %v363 = vlaneseq
        %v364 = vshrl.u32 %v363, 7
        %v365 = vsub.s32 2, %v364
        %v366 = vrot.slane %v211, %v365
        %v367 = vlaneseq
        %v368 = vshrl.u32 %v367, 7
        %v369 = vsub.s32 2, %v368
        %v370 = vrot.slane %v212, %v369
        %v371 = vmul.f32 %v320, %v362
        %v372 = vmul.f32 %v321, %v366
        %v373 = vmul.f32 %v322, %v370
        %v374 = vadd.f32 %v316, %v371
        %v375 = vadd.f32 %v317, %v372
        %v376 = vadd.f32 %v318, %v373
        %v377 = vlaneseq
        %v378 = vshrl.u32 %v377, 7
        %v379 = vsub.s32 3, %v378
        %v380 = vrot.slane %v204, %v379
        %v381 = vlaneseq
        %v382 = vshrl.u32 %v381, 7
        %v383 = vsub.s32 3, %v382
        %v384 = vrot.slane %v205, %v383
        %v385 = vlaneseq
        %v386 = vshrl.u32 %v385, 7
        %v387 = vsub.s32 3, %v386
        %v388 = vrot.slane %v206, %v387
        %v389 = vadd.f32 %v338, %v380
        %v390 = vadd.f32 %v339, %v384
        %v391 = vadd.f32 %v340, %v388
        %v392 = vtanh.pop %v389
        %v393 = vtanh.pop %v390
        %v394 = vtanh.pop %v391
        %v395 = vlaneseq
        %v396 = vshrl.u32 %v395, 7
        %v397 = vsub.s32 4, %v396
        %v398 = vrot.slane %v204, %v397
        %v399 = vlaneseq
        %v400 = vshrl.u32 %v399, 7
        %v401 = vsub.s32 4, %v400
        %v402 = vrot.slane %v205, %v401
        %v403 = vlaneseq
        %v404 = vshrl.u32 %v403, 7
        %v405 = vsub.s32 4, %v404
        %v406 = vrot.slane %v206, %v405
        %v407 = vmul.f32 %v392, %v398
        %v408 = vmul.f32 %v393, %v402
        %v409 = vmul.f32 %v394, %v406
        %v410 = vadd.f32 %v389, %v407
        %v411 = vadd.f32 %v390, %v408
        %v412 = vadd.f32 %v391, %v409
        %413 = vst [vmem:[%s195] sm:$0xff] %v410
        %414 = vst [vmem:[%s195 + $0x8] sm:$0xff] %v411
        %415 = vst [vmem:[%s195 + $0x10] sm:$0xff] %v412
        %v416 = vlaneseq
        %v417 = vshrl.u32 %v416, 7
        %v418 = vsub.s32 3, %v417
        %v419 = vrot.slane %v207, %v418
        %v420 = vlaneseq
        %v421 = vshrl.u32 %v420, 7
        %v422 = vsub.s32 3, %v421
        %v423 = vrot.slane %v208, %v422
        %v424 = vlaneseq
        %v425 = vshrl.u32 %v424, 7
        %v426 = vsub.s32 3, %v425
        %v427 = vrot.slane %v209, %v426
        %v428 = vadd.f32 %v356, %v419
        %v429 = vadd.f32 %v357, %v423
        %v430 = vadd.f32 %v358, %v427
        %v431 = vtanh.pop %v428
        %v432 = vtanh.pop %v429
        %v433 = vtanh.pop %v430
        %v434 = vlaneseq
        %v435 = vshrl.u32 %v434, 7
        %v436 = vsub.s32 4, %v435
        %v437 = vrot.slane %v207, %v436
        %v438 = vlaneseq
        %v439 = vshrl.u32 %v438, 7
        %v440 = vsub.s32 4, %v439
        %v441 = vrot.slane %v208, %v440
        %v442 = vlaneseq
        %v443 = vshrl.u32 %v442, 7
        %v444 = vsub.s32 4, %v443
        %v445 = vrot.slane %v209, %v444
        %v446 = vmul.f32 %v431, %v437
        %v447 = vmul.f32 %v432, %v441
        %v448 = vmul.f32 %v433, %v445
        %v449 = vadd.f32 %v428, %v446
        %v450 = vadd.f32 %v429, %v447
        %v451 = vadd.f32 %v430, %v448
        %s452 = scalar_lea.vmem %s195, 24 [#allocation5]
        %453 = vst [vmem:[%s452] sm:$0xff] %v449
        %454 = vst [vmem:[%s452 + $0x8] sm:$0xff] %v450
        %455 = vst [vmem:[%s452 + $0x10] sm:$0xff] %v451
        %v456 = vlaneseq
        %v457 = vshrl.u32 %v456, 7
        %v458 = vsub.s32 3, %v457
        %v459 = vrot.slane %v210, %v458
        %v460 = vlaneseq
        %v461 = vshrl.u32 %v460, 7
        %v462 = vsub.s32 3, %v461
        %v463 = vrot.slane %v211, %v462
        %v464 = vlaneseq
        %v465 = vshrl.u32 %v464, 7
        %v466 = vsub.s32 3, %v465
        %v467 = vrot.slane %v212, %v466
        %v468 = vadd.f32 %v374, %v459
        %v469 = vadd.f32 %v375, %v463
        %v470 = vadd.f32 %v376, %v467
        %v471 = vtanh.pop %v468
        %v472 = vtanh.pop %v469
        %v473 = vtanh.pop %v470
        %v474 = vlaneseq
        %v475 = vshrl.u32 %v474, 7
        %v476 = vsub.s32 4, %v475
        %v477 = vrot.slane %v210, %v476
        %v478 = vlaneseq
        %v479 = vshrl.u32 %v478, 7
        %v480 = vsub.s32 4, %v479
        %v481 = vrot.slane %v211, %v480
        %v482 = vlaneseq
        %v483 = vshrl.u32 %v482, 7
        %v484 = vsub.s32 4, %v483
        %v485 = vrot.slane %v212, %v484
        %v486 = vmul.f32 %v471, %v477
        %v487 = vmul.f32 %v472, %v481
        %v488 = vmul.f32 %v473, %v485
        %v489 = vadd.f32 %v468, %v486
        %v490 = vadd.f32 %v469, %v487
        %v491 = vadd.f32 %v470, %v488
        %s492 = scalar_lea.vmem %s195, 48 [#allocation5]
        %493 = vst [vmem:[%s492] sm:$0xff] %v489
        %494 = vst [vmem:[%s492 + $0x8] sm:$0xff] %v490
        %495 = vst [vmem:[%s492 + $0x10] sm:$0xff] %v491
        %s496 = sand.u32 %s95, 1
        %s497 = scalar_lea.sflag [#allocation4], %s496
        %s498 = sand.u32 %s95, 1
        %s499 = smul.addr %s498, 72
        %s500 = scalar_lea.vmem [#allocation5], %s499
        // Predicated region
        $region33: #{tpu_custom_call.1} parent=27 // pred_check
          %p501 = pneg %p105
        $region34: #{tpu_custom_call.1} parent=27 // pred_check_branch
          %503 = sbr.rel (%p501) target = $region36
        $region35: #{tpu_custom_call.1} parent=27 // pred_region
          %s504 = smul.u32 3, %s23
          %s506 = ssub.s32 1152, 1152
          %507 = vsyncadd %s497, %s506
          %s508 = smul.addr %s24, 3
          %s509 = sadd.s32 %s504, %s508
          %s510 = smul.addr %s509, 128
          %s511 = scalar_lea.hbm %s2, %s510
          %s512 = sshll.u32 %s500, 4
          %s513 = int_to_ptr.vmem [resolvable:$true] %s512
          %518 = dma.vmem_to_hbm [thread:$0]  %s513, 1152, %s511, %s497, 384, 1536, 24
        $region36: #{tpu_custom_call.1} parent=27 // pred_fallthru
          _
      $region28: #{tpu_custom_call.1} parent=5 // pred_fallthru
        _
      %p519 = scmp.le.s32.totalorder 2, %s14
      // Predicated region
      $region37: #{tpu_custom_call.1} parent=5 // pred_check
        %p520 = pneg %p519
      $region38: #{tpu_custom_call.1} parent=5 // pred_check_branch
        %522 = sbr.rel (%p520) target = $region40
      $region39: #{tpu_custom_call.1} parent=5 // pred_region
        %s523 = ssub.s32 %s14, 2
        // Predicated region
        $region41: #{tpu_custom_call.1} parent=39 // pred_check
          %p524 = pneg %p111
        $region42: #{tpu_custom_call.1} parent=39 // pred_check_branch
          %526 = sbr.rel (%p524) target = $region44
        $region43: #{tpu_custom_call.1} parent=39 // pred_region
          %s527 = sand.u32 %s96, 1
          %s528 = scalar_lea.sflag [#allocation4], %s527
          %s529 = sand.u32 %s96, 1
          %s530 = smul.addr %s529, 72
          %s531 = scalar_lea.vmem [#allocation5], %s530
          %532 = dma.done %s528, 1152
        $region44: #{tpu_custom_call.1} parent=39 // pred_fallthru
          _
      $region40: #{tpu_custom_call.1} parent=5 // pred_fallthru
        _
    $region6: #{tpu_custom_call.1} parent=1 // loop_footer
      %s18 = sadd.s32 1, %s14
    $region7: #{tpu_custom_call.1} parent=1 // loop_footer_branch
      %13 = sbr.rel target = $region3
    $region8: #{tpu_custom_call.1} parent=1 // loop_exit
      _
    %533 = vsyncpa [#allocation3], 1
    %s534 = scalar_lea.sflag [#allocation3], 1
    %535 = vsyncpa %s534, 1
    %536 = vsyncpa [#allocation4], 1
    %s537 = scalar_lea.sflag [#allocation4], 1
    %538 = vsyncpa %s537, 1

</llo_original>
